<compile_context>
chip_gen: v5e
topology: v5e:2x2
jax: 0.10.0
libtpu: 0.0.40
codegen_flags: <defaults>
</compile_context>

<pallas_src>
import functools
import math

import jax
import jax.numpy as jnp
import numpy as np
from jax import lax
from jax.experimental import pallas as pl
from jax.experimental.pallas import tpu as pltpu

CROSSOVER_MAGNITUDE = 0.3  # crossover branch not implemented (see TODO above)
MUTATION_FACTOR = 0.3
SCALE = 1.0 / math.sqrt(8.0)  # matches torch.sqrt(torch.tensor(8))


def _fused_kernel(q_ref, k_ref, v_ref, noise_ref,      # (bb,A,A) (bb,A,A) (bb,A) (bb,H*A,A)
                  wcat_ref, bcol_ref, brow_ref,         # (3A,A)  (A,2)  (2,A)
                  woT_ref,                              # (H*A, D)
                  o_ref,                                 # (bb, D)
                  x_sc,                                  # VMEM scratch (bb, H*A)
                  *, n_head):
    bb, A, _ = q_ref.shape
    H = n_head

    # ---- static views into the packed parameter blocks ----------------------
    wq = wcat_ref[0:A, :]            # W_Q   (out a, in l)
    wkT = wcat_ref[A:2 * A, :]       # W_K^T (in l, out c)
    wv = wcat_ref[2 * A:3 * A, :]    # W_V   (out c, in l)
    bqc = bcol_ref[:, 0:1]           # b_Q as column (A, 1)
    bvc = bcol_ref[:, 1:2]           # b_V as column (A, 1)
    bk = brow_ref[0:1, :]            # b_K row (1, A)
    bo = brow_ref[1:2, :]            # b_O row (1, D)

    # ---- batched shared projections (one MXU dot each for the whole block) --
    # Qp^T and Vp^T are produced directly via last-dim/last-dim contractions
    # (MXU-native "transposed rhs" form), so no XLU transpose is ever emitted
    # and the per-b score matmul is a plain (M,K)@(K,N) product.
    q2 = q_ref[...].reshape(bb * A, A)
    k2 = k_ref[...].reshape(bb * A, A)
    qpT_all = lax.dot_general(wq, q2, (((1,), (1,)), ((), ())),
                              preferred_element_type=jnp.float32) + bqc   # (A, bb*A) = Qp^T
    kp_all = jnp.dot(k2, wkT, preferred_element_type=jnp.float32) + bk    # (bb*A, A) = Kp
    vpT_all = lax.dot_general(wv, v_ref[...], (((1,), (1,)), ((), ())),
                              preferred_element_type=jnp.float32) + bvc   # (A, bb)   = Vp^T

    ones_col = jnp.ones((A, 1), jnp.float32)
    for b in range(bb):  # bb is small and static -> unrolled
        qpT = qpT_all[:, b * A:(b + 1) * A]                    # (A, A)
        kp = kp_all[b * A:(b + 1) * A, :]                      # (A, A)
        s = jnp.dot(qpT, kp, preferred_element_type=jnp.float32)   # Qp^T @ Kp

        # per-head mutation; the noise already carries the 1/sqrt(8) scale.
        s_h = jnp.tile(s, (H, 1)) * noise_ref[b]               # (H*A, A)

        # row softmax; the two row reductions (p@V and sum(p)) are fused into
        # ONE MXU matmul against [Vp_b | 1] instead of two XLU reductions.
        m = jnp.max(s_h, axis=-1, keepdims=True)
        p = jnp.exp(s_h - m)
        vp2 = jnp.concatenate([vpT_all[:, b:b + 1], ones_col], axis=1)  # (A, 2)
        nd = jnp.dot(p, vp2, preferred_element_type=jnp.float32)        # (H*A, 2)
        x_sc[b, :] = nd[:, 0] / nd[:, 1]        # softmax(s_h) @ Vp (exact divide)

    # ---- final W_O linear, fused in-kernel (attn_out never leaves VMEM) -----
    y = jnp.dot(x_sc[...], woT_ref[...], preferred_element_type=jnp.float32) + bo
    o_ref[...] = y.astype(o_ref.dtype)


def _derive_vmem_limit(block_shapes, scratch_shapes, bytes_per=4):
    """Rough VMEM budget: (8,128)-padded blocks, double-buffered, + slack."""
    def padded(shape):
        s = list(shape)
        if len(s) == 1:
            s = [1] + s
        lead = int(np.prod(s[:-2])) if len(s) > 2 else 1
        r = -(-s[-2] // 8) * 8
        c = -(-s[-1] // 128) * 128
        return lead * r * c * bytes_per

    total = 2 * sum(padded(s) for s in block_shapes)      # double-buffered I/O
    total += sum(padded(s) for s in scratch_shapes)
    total += 1 << 20                                      # slack
    # Floor at 8 MiB (estimate safety), cap at v7x's 64 MiB physical VMEM.
    return int(min(max(total, 8 << 20), 64 << 20))


def linw_attention_forward(Q, K, V, W_Q, b_Q, W_K, b_K, W_V, b_V, W_O, b_O,
                           key, n_head, *, mutation_factor=MUTATION_FACTOR,
                           return_noise=False, batch_block=None):
    """Fused Pallas forward of LinW_Attention_Module (mutation branch)."""
    B, A, A2 = Q.shape
    assert A == A2 and V.shape == (B, A)
    H = int(n_head)
    dim_emb = W_O.shape[0]
    assert W_O.shape == (dim_emb, H * A)
    # nn.Linear(dim_emb, dim_emb) applied over a last-dim-A tensor forces
    # dim_emb == A; the row-bias packing below relies on it.
    assert dim_emb == A

    # Whole batch per grid step by default (per-step overhead would dominate
    # at these tiny shapes); batch_block can split very large B (pick a
    # multiple-of-2 block count on v7x to shard across both TensorCores).
    bb = B if batch_block is None else int(batch_block)
    assert B % bb == 0 and (bb == B or bb % 8 == 0)
    nb = B // bb

    # Mutation noise (torch: randn(shape).uniform_(1-mf, 1+mf) == U[1-mf,1+mf]),
    # drawn once per call -> reproducible for a given key and independent of
    # blocking.  The 1/sqrt(8) score scale is folded in for free, and the
    # per-(b, h) maps are pre-flattened to (B, H*A, A) so the kernel never
    # reshapes a 4-D block.
    noise = jax.random.uniform(key, (B, H, A, A), dtype=jnp.float32,
                               minval=1.0 - mutation_factor,
                               maxval=1.0 + mutation_factor)
    scaled_noise = (noise * SCALE).reshape(B, H * A, A)

    # Packed parameters: 11 tiny per-step DMAs -> 4.  Shapes are chosen so
    # every in-kernel contraction is MXU-native and biases broadcast without
    # in-kernel relayouts.
    wcat = jnp.concatenate([W_Q, W_K.T, W_V], axis=0)      # (3A, A)
    bcol = jnp.stack([b_Q, b_V], axis=1)                   # (A, 2) columns
    brow = jnp.stack([b_K, b_O], axis=0)                   # (2, A) rows (dim_emb == A)
    woT = W_O.T                                            # (H*A, dim_emb)

    idx_b3 = lambda i: (i, 0, 0)
    idx_b2 = lambda i: (i, 0)
    idx_c2 = lambda i: (0, 0)

    in_block_shapes = [
        (bb, A, A), (bb, A, A), (bb, A), (bb, H * A, A),
        (3 * A, A), (A, 2), (2, A), (H * A, dim_emb),
    ]
    in_specs = [
        pl.BlockSpec((bb, A, A), idx_b3),            # Q
        pl.BlockSpec((bb, A, A), idx_b3),            # K
        pl.BlockSpec((bb, A), idx_b2),               # V
        pl.BlockSpec((bb, H * A, A), idx_b3),        # scaled mutation noise
        pl.BlockSpec((3 * A, A), idx_c2),            # [W_Q ; W_K^T ; W_V]
        pl.BlockSpec((A, 2), idx_c2),                # [b_Q | b_V] columns
        pl.BlockSpec((2, A), idx_c2),                # [b_K ; b_O] rows
        pl.BlockSpec((H * A, dim_emb), idx_c2),      # W_O^T
    ]
    # NOTE: dim_emb=16 output lanes -> masked stores; at production sizes
    # present a >=128-wide last dim instead (see TODO at top).
    out_specs = pl.BlockSpec((bb, dim_emb), idx_b2)
    out_shape = jax.ShapeDtypeStruct((B, dim_emb), jnp.float32)
    scratch = [pltpu.VMEM((bb, H * A), jnp.float32)]

    vmem_limit = _derive_vmem_limit(
        in_block_shapes + [(bb, dim_emb)], [(bb, H * A)])

    kernel = functools.partial(_fused_kernel, n_head=H)
    fn = pl.pallas_call(
        kernel,
        out_shape=out_shape,
        grid=(nb,),
        in_specs=in_specs,
        out_specs=out_specs,
        scratch_shapes=scratch,
        compiler_params=pltpu.CompilerParams(
            dimension_semantics=("parallel",),
            vmem_limit_bytes=vmem_limit,
        ),
    )
    out = fn(Q, K, V, scaled_noise, wcat, bcol, brow, woT)
    if return_noise:
        return out, noise
    return out


def _reference(Q, K, V, W_Q, b_Q, W_K, b_K, W_V, b_V, W_O, b_O, noise):
    """Pure-JAX reference of the mutation-branch forward (same noise)."""
    B, A, _ = Q.shape
    H = noise.shape[1]
    Qp = jnp.einsum("bjl,al->bja", Q, W_Q) + b_Q       # nn.Linear W_Q
    Kp = jnp.einsum("bjl,cl->bjc", K, W_K) + b_K       # nn.Linear W_K
    Vp = jnp.einsum("bl,cl->bc", V, W_V) + b_V         # nn.Linear W_V  (B, A)
    s = jnp.einsum("bja,bjc->bac", Qp, Kp) / math.sqrt(8.0)   # Q^T @ K / sqrt(8)
    s_h = s[:, None, :, :] * noise                     # mutate per head
    attn = jax.nn.softmax(s_h, axis=-1)
    out = jnp.einsum("bhac,bc->bha", attn, Vp)         # attention @ V, squeeze
    return out.reshape(B, H * A) @ W_O.T + b_O


if __name__ == "__main__":
    batch, dim_emb, n_head = 2, 16, 2        # dim_emb == activation_size
    A = dim_emb

    key = jax.random.PRNGKey(0)
    kq, kk, kv, k1, k2, k3, k4, k5, k6, k7, k8, knoise = jax.random.split(key, 12)
    Q = jax.random.normal(kq, (batch, A, A), dtype=jnp.float32)
    K = jax.random.normal(kk, (batch, A, A), dtype=jnp.float32)
    V = jax.random.normal(kv, (batch, A), dtype=jnp.float32)

    def linear_init(kw, kb, out_f, in_f):
        bound = 1.0 / math.sqrt(in_f)
        W = jax.random.uniform(kw, (out_f, in_f), minval=-bound, maxval=bound,
                               dtype=jnp.float32)
        b = jax.random.uniform(kb, (out_f,), minval=-bound, maxval=bound,
                               dtype=jnp.float32)
        return W, b

    W_Q, b_Q = linear_init(k1, k2, A, A)
    W_K, b_K = linear_init(k3, k4, A, A)
    W_V, b_V = linear_init(k5, k6, A, A)
    W_O, b_O = linear_init(k7, k8, dim_emb, dim_emb * n_head)

    out, noise = linw_attention_forward(Q, K, V, W_Q, b_Q, W_K, b_K, W_V, b_V,
                                        W_O, b_O, knoise, n_head,
                                        return_noise=True)
    out, noise = jax.block_until_ready((out, noise))
    assert out.shape == (batch, dim_emb)

    # Mutation noise must lie in [1 - mf, 1 + mf).
    lo, hi = 1.0 - MUTATION_FACTOR, 1.0 + MUTATION_FACTOR
    n_min, n_max = float(jnp.min(noise)), float(jnp.max(noise))
    assert lo - 1e-6 <= n_min and n_max <= hi + 1e-6, (n_min, n_max)

    # End-to-end numeric check against the pure-JAX reference (same noise).
    # Tolerance covers MXU default-precision f32 matmuls / ordering deltas.
    ref = _reference(Q, K, V, W_Q, b_Q, W_K, b_K, W_V, b_V, W_O, b_O, noise)
    np.testing.assert_allclose(np.asarray(out), np.asarray(ref),
                               rtol=1e-2, atol=1e-2)

    print("KERNEL_OK")
</pallas_src>

<mosaic_0001>
module attributes {stable_mosaic.version = 11 : i64} {
  func.func @_fused_kernel(%arg0: i32, %arg1: memref<2x16x16xf32, #tpu.memory_space<vmem>>, %arg2: memref<2x16x16xf32, #tpu.memory_space<vmem>>, %arg3: memref<2x16xf32, #tpu.memory_space<vmem>>, %arg4: memref<2x32x16xf32, #tpu.memory_space<vmem>>, %arg5: memref<48x16xf32, #tpu.memory_space<vmem>>, %arg6: memref<16x2xf32, #tpu.memory_space<vmem>>, %arg7: memref<2x16xf32, #tpu.memory_space<vmem>>, %arg8: memref<32x16xf32, #tpu.memory_space<vmem>>, %arg9: memref<2x16xf32, #tpu.memory_space<vmem>>, %arg10: memref<2x32xf32, #tpu.memory_space<vmem>>) attributes {dimension_semantics = [#tpu.dimension_semantics<parallel>], iteration_bounds = array<i64: 1>, scalar_prefetch = 0 : i64, scratch_operands = 1 : i64, tpu.core_type = #tpu.core_type<tc>, window_params = [{transform_indices = @transform_0, window_bounds = array<i64: 2, 16, 16>}, {transform_indices = @transform_1, window_bounds = array<i64: 2, 16, 16>}, {transform_indices = @transform_2, window_bounds = array<i64: 2, 16>}, {transform_indices = @transform_3, window_bounds = array<i64: 2, 32, 16>}, {pipeline_mode = #tpu.pipeline_mode<synchronous>, transform_indices = @transform_4, window_bounds = array<i64: 48, 16>}, {pipeline_mode = #tpu.pipeline_mode<synchronous>, transform_indices = @transform_5, window_bounds = array<i64: 16, 2>}, {pipeline_mode = #tpu.pipeline_mode<synchronous>, transform_indices = @transform_6, window_bounds = array<i64: 2, 16>}, {pipeline_mode = #tpu.pipeline_mode<synchronous>, transform_indices = @transform_7, window_bounds = array<i64: 32, 16>}, {transform_indices = @transform_8, window_bounds = array<i64: 2, 16>}]} {
    %c0 = arith.constant 0 : index
    %c0_0 = arith.constant 0 : index
    %0 = vector.load %arg5[%c0, %c0_0] : memref<48x16xf32, #tpu.memory_space<vmem>>, vector<16x16xf32>
    %c16 = arith.constant 16 : index
    %c0_1 = arith.constant 0 : index
    %1 = vector.load %arg5[%c16, %c0_1] : memref<48x16xf32, #tpu.memory_space<vmem>>, vector<16x16xf32>
    %c32 = arith.constant 32 : index
    %c0_2 = arith.constant 0 : index
    %2 = vector.load %arg5[%c32, %c0_2] : memref<48x16xf32, #tpu.memory_space<vmem>>, vector<16x16xf32>
    %c0_3 = arith.constant 0 : index
    %c0_4 = arith.constant 0 : index
    %3 = vector.load %arg6[%c0_3, %c0_4] : memref<16x2xf32, #tpu.memory_space<vmem>>, vector<16x1xf32>
    %c0_5 = arith.constant 0 : index
    %c1 = arith.constant 1 : index
    %4 = vector.load %arg6[%c0_5, %c1] : memref<16x2xf32, #tpu.memory_space<vmem>>, vector<16x1xf32>
    %c0_6 = arith.constant 0 : index
    %c0_7 = arith.constant 0 : index
    %5 = vector.load %arg7[%c0_6, %c0_7] : memref<2x16xf32, #tpu.memory_space<vmem>>, vector<1x16xf32>
    %c1_8 = arith.constant 1 : index
    %c0_9 = arith.constant 0 : index
    %6 = vector.load %arg7[%c1_8, %c0_9] : memref<2x16xf32, #tpu.memory_space<vmem>>, vector<1x16xf32>
    %c0_10 = arith.constant 0 : index
    %c0_11 = arith.constant 0 : index
    %c0_12 = arith.constant 0 : index
    %7 = vector.load %arg1[%c0_10, %c0_11, %c0_12] : memref<2x16x16xf32, #tpu.memory_space<vmem>>, vector<2x16x16xf32>
    %8 = vector.shape_cast %7 : vector<2x16x16xf32> to vector<32x16xf32>
    %c0_13 = arith.constant 0 : index
    %c0_14 = arith.constant 0 : index
    %c0_15 = arith.constant 0 : index
    %9 = vector.load %arg2[%c0_13, %c0_14, %c0_15] : memref<2x16x16xf32, #tpu.memory_space<vmem>>, vector<2x16x16xf32>
    %10 = vector.shape_cast %9 : vector<2x16x16xf32> to vector<32x16xf32>
    %cst = arith.constant dense<0.000000e+00> : vector<16x32xf32>
    %11 = tpu.matmul %0, %8, %cst {dimension_numbers = #tpu.dot_dimension_numbers<[1], [1], [0], [0], [0, 0, 1, 0], [], []>} : vector<16x16xf32>, vector<32x16xf32>, vector<16x32xf32> -> vector<16x32xf32>
    %12 = vector.broadcast %3 : vector<16x1xf32> to vector<16x32xf32>
    %13 = arith.addf %11, %12 : vector<16x32xf32>
    %cst_16 = arith.constant dense<0.000000e+00> : vector<32x16xf32>
    %14 = tpu.matmul %10, %1, %cst_16 {dimension_numbers = #tpu.dot_dimension_numbers<[1], [0], [0], [1], [0, 0, 1, 1], [], []>} : vector<32x16xf32>, vector<16x16xf32>, vector<32x16xf32> -> vector<32x16xf32>
    %15 = vector.broadcast %5 : vector<1x16xf32> to vector<32x16xf32>
    %16 = arith.addf %14, %15 : vector<32x16xf32>
    %c0_17 = arith.constant 0 : index
    %c0_18 = arith.constant 0 : index
    %17 = vector.load %arg3[%c0_17, %c0_18] : memref<2x16xf32, #tpu.memory_space<vmem>>, vector<2x16xf32>
    %cst_19 = arith.constant dense<0.000000e+00> : vector<16x2xf32>
    %18 = tpu.matmul %2, %17, %cst_19 {dimension_numbers = #tpu.dot_dimension_numbers<[1], [1], [0], [0], [0, 0, 1, 0], [], []>} : vector<16x16xf32>, vector<2x16xf32>, vector<16x2xf32> -> vector<16x2xf32>
    %19 = vector.broadcast %4 : vector<16x1xf32> to vector<16x2xf32>
    %20 = arith.addf %18, %19 : vector<16x2xf32>
    %cst_20 = arith.constant 1.000000e+00 : f32
    %21 = vector.broadcast %cst_20 : f32 to vector<16x1xf32>
    %22 = vector.extract_strided_slice %13 {offsets = [0, 0], sizes = [16, 16], strides = [1, 1]} : vector<16x32xf32> to vector<16x16xf32>
    %23 = vector.extract_strided_slice %16 {offsets = [0, 0], sizes = [16, 16], strides = [1, 1]} : vector<32x16xf32> to vector<16x16xf32>
    %cst_21 = arith.constant dense<0.000000e+00> : vector<16x16xf32>
    %24 = tpu.matmul %22, %23, %cst_21 {dimension_numbers = #tpu.dot_dimension_numbers<[1], [0], [0], [1], [0, 0, 1, 1], [], []>} : vector<16x16xf32>, vector<16x16xf32>, vector<16x16xf32> -> vector<16x16xf32>
    %25 = tpu.concatenate %24, %24 in 0 : vector<16x16xf32>, vector<16x16xf32> -> vector<32x16xf32>
    %c0_22 = arith.constant 0 : index
    %c0_23 = arith.constant 0 : index
    %c0_24 = arith.constant 0 : index
    %26 = vector.load %arg4[%c0_22, %c0_23, %c0_24] : memref<2x32x16xf32, #tpu.memory_space<vmem>>, vector<1x32x16xf32>
    %27 = vector.shape_cast %26 : vector<1x32x16xf32> to vector<32x16xf32>
    %28 = arith.mulf %25, %27 : vector<32x16xf32>
    %cst_25 = arith.constant dense<0xFF800000> : vector<32xf32>
    %29 = vector.multi_reduction <maximumf>, %28, %cst_25 [1] : vector<32x16xf32> to vector<32xf32>
    %30 = vector.shape_cast %29 : vector<32xf32> to vector<32x1xf32>
    %31 = vector.broadcast %30 : vector<32x1xf32> to vector<32x16xf32>
    %32 = arith.subf %28, %31 : vector<32x16xf32>
    %33 = math.exp %32 : vector<32x16xf32>
    %34 = vector.extract_strided_slice %20 {offsets = [0, 0], sizes = [16, 1], strides = [1, 1]} : vector<16x2xf32> to vector<16x1xf32>
    %35 = tpu.concatenate %34, %21 in 1 : vector<16x1xf32>, vector<16x1xf32> -> vector<16x2xf32>
    %cst_26 = arith.constant dense<0.000000e+00> : vector<32x2xf32>
    %36 = tpu.matmul %33, %35, %cst_26 {dimension_numbers = #tpu.dot_dimension_numbers<[1], [0], [0], [1], [0, 0, 1, 1], [], []>} : vector<32x16xf32>, vector<16x2xf32>, vector<32x2xf32> -> vector<32x2xf32>
    %37 = vector.extract_strided_slice %36 {offsets = [0, 0], sizes = [32, 1], strides = [1, 1]} : vector<32x2xf32> to vector<32x1xf32>
    %38 = vector.shape_cast %37 : vector<32x1xf32> to vector<32xf32>
    %39 = vector.extract_strided_slice %36 {offsets = [0, 1], sizes = [32, 1], strides = [1, 1]} : vector<32x2xf32> to vector<32x1xf32>
    %40 = vector.shape_cast %39 : vector<32x1xf32> to vector<32xf32>
    %41 = arith.divf %38, %40 : vector<32xf32>
    %c0_27 = arith.constant 0 : index
    %c0_28 = arith.constant 0 : index
    %42 = vector.load %arg10[%c0_27, %c0_28] : memref<2x32xf32, #tpu.memory_space<vmem>>, vector<1x32xf32>
    %43 = vector.shape_cast %42 : vector<1x32xf32> to vector<32xf32>
    %44 = vector.shape_cast %41 : vector<32xf32> to vector<1x32xf32>
    tpu.vector_store %arg10[%c0_27, %c0_28], %44 {strides = array<i32>} : memref<2x32xf32, #tpu.memory_space<vmem>>, vector<1x32xf32>,
    %45 = vector.extract_strided_slice %13 {offsets = [0, 16], sizes = [16, 16], strides = [1, 1]} : vector<16x32xf32> to vector<16x16xf32>
    %46 = vector.extract_strided_slice %16 {offsets = [16, 0], sizes = [16, 16], strides = [1, 1]} : vector<32x16xf32> to vector<16x16xf32>
    %cst_29 = arith.constant dense<0.000000e+00> : vector<16x16xf32>
    %47 = tpu.matmul %45, %46, %cst_29 {dimension_numbers = #tpu.dot_dimension_numbers<[1], [0], [0], [1], [0, 0, 1, 1], [], []>} : vector<16x16xf32>, vector<16x16xf32>, vector<16x16xf32> -> vector<16x16xf32>
    %48 = tpu.concatenate %47, %47 in 0 : vector<16x16xf32>, vector<16x16xf32> -> vector<32x16xf32>
    %c1_30 = arith.constant 1 : index
    %c0_31 = arith.constant 0 : index
    %c0_32 = arith.constant 0 : index
    %49 = vector.load %arg4[%c1_30, %c0_31, %c0_32] : memref<2x32x16xf32, #tpu.memory_space<vmem>>, vector<1x32x16xf32>
    %50 = vector.shape_cast %49 : vector<1x32x16xf32> to vector<32x16xf32>
    %51 = arith.mulf %48, %50 : vector<32x16xf32>
    %cst_33 = arith.constant dense<0xFF800000> : vector<32xf32>
    %52 = vector.multi_reduction <maximumf>, %51, %cst_33 [1] : vector<32x16xf32> to vector<32xf32>
    %53 = vector.shape_cast %52 : vector<32xf32> to vector<32x1xf32>
    %54 = vector.broadcast %53 : vector<32x1xf32> to vector<32x16xf32>
    %55 = arith.subf %51, %54 : vector<32x16xf32>
    %56 = math.exp %55 : vector<32x16xf32>
    %57 = vector.extract_strided_slice %20 {offsets = [0, 1], sizes = [16, 1], strides = [1, 1]} : vector<16x2xf32> to vector<16x1xf32>
    %58 = tpu.concatenate %57, %21 in 1 : vector<16x1xf32>, vector<16x1xf32> -> vector<16x2xf32>
    %cst_34 = arith.constant dense<0.000000e+00> : vector<32x2xf32>
    %59 = tpu.matmul %56, %58, %cst_34 {dimension_numbers = #tpu.dot_dimension_numbers<[1], [0], [0], [1], [0, 0, 1, 1], [], []>} : vector<32x16xf32>, vector<16x2xf32>, vector<32x2xf32> -> vector<32x2xf32>
    %60 = vector.extract_strided_slice %59 {offsets = [0, 0], sizes = [32, 1], strides = [1, 1]} : vector<32x2xf32> to vector<32x1xf32>
    %61 = vector.shape_cast %60 : vector<32x1xf32> to vector<32xf32>
    %62 = vector.extract_strided_slice %59 {offsets = [0, 1], sizes = [32, 1], strides = [1, 1]} : vector<32x2xf32> to vector<32x1xf32>
    %63 = vector.shape_cast %62 : vector<32x1xf32> to vector<32xf32>
    %64 = arith.divf %61, %63 : vector<32xf32>
    %c1_35 = arith.constant 1 : index
    %c0_36 = arith.constant 0 : index
    %65 = vector.load %arg10[%c1_35, %c0_36] : memref<2x32xf32, #tpu.memory_space<vmem>>, vector<1x32xf32>
    %66 = vector.shape_cast %65 : vector<1x32xf32> to vector<32xf32>
    %67 = vector.shape_cast %64 : vector<32xf32> to vector<1x32xf32>
    tpu.vector_store %arg10[%c1_35, %c0_36], %67 {strides = array<i32>} : memref<2x32xf32, #tpu.memory_space<vmem>>, vector<1x32xf32>,
    %c0_37 = arith.constant 0 : index
    %c0_38 = arith.constant 0 : index
    %68 = vector.load %arg10[%c0_37, %c0_38] : memref<2x32xf32, #tpu.memory_space<vmem>>, vector<2x32xf32>
    %c0_39 = arith.constant 0 : index
    %c0_40 = arith.constant 0 : index
    %69 = vector.load %arg8[%c0_39, %c0_40] : memref<32x16xf32, #tpu.memory_space<vmem>>, vector<32x16xf32>
    %cst_41 = arith.constant dense<0.000000e+00> : vector<2x16xf32>
    %70 = tpu.matmul %68, %69, %cst_41 {dimension_numbers = #tpu.dot_dimension_numbers<[1], [0], [0], [1], [0, 0, 1, 1], [], []>} : vector<2x32xf32>, vector<32x16xf32>, vector<2x16xf32> -> vector<2x16xf32>
    %71 = vector.broadcast %6 : vector<1x16xf32> to vector<2x16xf32>
    %72 = arith.addf %70, %71 : vector<2x16xf32>
    %c0_42 = arith.constant 0 : index
    %c0_43 = arith.constant 0 : index
    %73 = vector.load %arg9[%c0_42, %c0_43] : memref<2x16xf32, #tpu.memory_space<vmem>>, vector<2x16xf32>
    tpu.vector_store %arg9[%c0_42, %c0_43], %72 {strides = array<i32>} : memref<2x16xf32, #tpu.memory_space<vmem>>, vector<2x16xf32>,
    return
  }
  func.func @transform_0(%arg0: i32) -> (i32, i32, i32) {
    %c0_i32 = arith.constant 0 : i32
    %c0_i32_0 = arith.constant 0 : i32
    %c0_i32_1 = arith.constant 0 : i32
    return %arg0, %c0_i32, %c0_i32_0 : i32, i32, i32
  }
  func.func @transform_1(%arg0: i32) -> (i32, i32, i32) {
    %c0_i32 = arith.constant 0 : i32
    %c0_i32_0 = arith.constant 0 : i32
    %c0_i32_1 = arith.constant 0 : i32
    return %arg0, %c0_i32, %c0_i32_0 : i32, i32, i32
  }
  func.func @transform_2(%arg0: i32) -> (i32, i32) {
    %c0_i32 = arith.constant 0 : i32
    %c0_i32_0 = arith.constant 0 : i32
    return %arg0, %c0_i32 : i32, i32
  }
  func.func @transform_3(%arg0: i32) -> (i32, i32, i32) {
    %c0_i32 = arith.constant 0 : i32
    %c0_i32_0 = arith.constant 0 : i32
    %c0_i32_1 = arith.constant 0 : i32
    return %arg0, %c0_i32, %c0_i32_0 : i32, i32, i32
  }
  func.func @transform_4(%arg0: i32) -> (i32, i32) {
    %c0_i32 = arith.constant 0 : i32
    %c0_i32_0 = arith.constant 0 : i32
    %c0_i32_1 = arith.constant 0 : i32
    return %c0_i32, %c0_i32_0 : i32, i32
  }
  func.func @transform_5(%arg0: i32) -> (i32, i32) {
    %c0_i32 = arith.constant 0 : i32
    %c0_i32_0 = arith.constant 0 : i32
    %c0_i32_1 = arith.constant 0 : i32
    return %c0_i32, %c0_i32_0 : i32, i32
  }
  func.func @transform_6(%arg0: i32) -> (i32, i32) {
    %c0_i32 = arith.constant 0 : i32
    %c0_i32_0 = arith.constant 0 : i32
    %c0_i32_1 = arith.constant 0 : i32
    return %c0_i32, %c0_i32_0 : i32, i32
  }
  func.func @transform_7(%arg0: i32) -> (i32, i32) {
    %c0_i32 = arith.constant 0 : i32
    %c0_i32_0 = arith.constant 0 : i32
    %c0_i32_1 = arith.constant 0 : i32
    return %c0_i32, %c0_i32_0 : i32, i32
  }
  func.func @transform_8(%arg0: i32) -> (i32, i32) {
    %c0_i32 = arith.constant 0 : i32
    %c0_i32_0 = arith.constant 0 : i32
    return %arg0, %c0_i32 : i32, i32
  }
}

</mosaic_0001>

<llo_original>
// kernel: tpu_custom_call.1
$region0: #{tpu_custom_call.1}
  #allocation0 [shape = 'u32[]', space=smem, size = 0x4, offset = 0x4, fixed_abs, tag = 'smem constant byte address 0x4 - core index']
  #allocation1 [shape = 'u32[72,128]{1,0:T(1,128)}', space=vmem, size = 0x9000, scoped, tag = 'internal scratch']
  #allocation2 [shape = 'f32[2,32]{1,0:T(2,128)}', space=vmem, size = 0x400, scoped, tag = 'scratch operand']
  %s0 = inlined_call_operand.vmem [shape: f32[2,16,16], index: 0, kind: input, shape index: {}]
  %s1 = inlined_call_operand.vmem [shape: f32[2,16,16], index: 1, kind: input, shape index: {}]
  %s2 = inlined_call_operand.vmem [shape: f32[2,16], index: 2, kind: input, shape index: {}]
  %s3 = inlined_call_operand.vmem [shape: f32[2,32,16], index: 3, kind: input, shape index: {}]
  %s4 = inlined_call_operand.vmem [shape: f32[48,16], index: 4, kind: input, shape index: {}]
  %s5 = inlined_call_operand.vmem [shape: f32[16,2], index: 5, kind: input, shape index: {}]
  %s6 = inlined_call_operand.vmem [shape: f32[2,16], index: 6, kind: input, shape index: {}]
  %s7 = inlined_call_operand.vmem [shape: f32[32,16], index: 7, kind: input, shape index: {}]
  %s8 = inlined_call_operand.hbm [shape: f32[2,16], index: 8, kind: output, shape index: {}]
  %s9 = sld [smem:[#allocation0]]
  $region42: #{tpu_custom_call.1} parent=0
    _
  %s11 = ssub.s32 1, %s9
  %s12 = scalar_select 0, %s11, %s9
  $region1: #{tpu_custom_call.1} parent=0
    #allocation3 [shape = 'u8[1024]{0}', space=vmem, size = 0x400, scoped, tag = 'output window, operand 0, single buffered']
    #allocation4 [shape = 's32[1]{0}', space=sflag, size = 0x4, scoped, tag = 'scoped memory for tpu_custom_call.1']
    %13 = vsyncpa [#allocation4], 0
    // Predicated region
    $region2: #{tpu_custom_call.1} parent=1 // pred_check
      _
    $region3: #{tpu_custom_call.1} parent=1 // pred_check_branch
      %15 = sbr.rel (0) target = $region5
    $region4: #{tpu_custom_call.1} parent=1 // pred_region
      _
    $region5: #{tpu_custom_call.1} parent=1 // pred_fallthru
      _
    // Predicated region
    $region6: #{tpu_custom_call.1} parent=1 // pred_check
      _
    $region7: #{tpu_custom_call.1} parent=1 // pred_check_branch
      %17 = sbr.rel (0) target = $region9
    $region8: #{tpu_custom_call.1} parent=1 // pred_region
      _
    $region9: #{tpu_custom_call.1} parent=1 // pred_fallthru
      _
    // Predicated region
    $region10: #{tpu_custom_call.1} parent=1 // pred_check
      _
    $region11: #{tpu_custom_call.1} parent=1 // pred_check_branch
      %19 = sbr.rel (0) target = $region13
    $region12: #{tpu_custom_call.1} parent=1 // pred_region
      _
    $region13: #{tpu_custom_call.1} parent=1 // pred_fallthru
      _
    // Predicated region
    $region14: #{tpu_custom_call.1} parent=1 // pred_check
      _
    $region15: #{tpu_custom_call.1} parent=1 // pred_check_branch
      %21 = sbr.rel (0) target = $region17
    $region16: #{tpu_custom_call.1} parent=1 // pred_region
      _
    $region17: #{tpu_custom_call.1} parent=1 // pred_fallthru
      _
    // Predicated region
    $region18: #{tpu_custom_call.1} parent=1 // pred_check
      _
    $region19: #{tpu_custom_call.1} parent=1 // pred_check_branch
      %23 = sbr.rel (0) target = $region21
    $region20: #{tpu_custom_call.1} parent=1 // pred_region
      _
    $region21: #{tpu_custom_call.1} parent=1 // pred_fallthru
      _
    // Predicated region
    $region22: #{tpu_custom_call.1} parent=1 // pred_check
      _
    $region23: #{tpu_custom_call.1} parent=1 // pred_check_branch
      %25 = sbr.rel (0) target = $region25
    $region24: #{tpu_custom_call.1} parent=1 // pred_region
      _
    $region25: #{tpu_custom_call.1} parent=1 // pred_fallthru
      _
    // Predicated region
    $region26: #{tpu_custom_call.1} parent=1 // pred_check
      _
    $region27: #{tpu_custom_call.1} parent=1 // pred_check_branch
      %27 = sbr.rel (0) target = $region29
    $region28: #{tpu_custom_call.1} parent=1 // pred_region
      _
    $region29: #{tpu_custom_call.1} parent=1 // pred_fallthru
      _
    // Predicated region
    $region30: #{tpu_custom_call.1} parent=1 // pred_check
      _
    $region31: #{tpu_custom_call.1} parent=1 // pred_check_branch
      %29 = sbr.rel (0) target = $region33
    $region32: #{tpu_custom_call.1} parent=1 // pred_region
      _
    $region33: #{tpu_custom_call.1} parent=1 // pred_fallthru
      _
    %v30 = vld [vmem:[%s4] sm:$0xff]
    %v31 = vld [vmem:[%s4 + $0x8] sm:$0xff]
    %v32 = vld [vmem:[%s4 + $0x10] sm:$0xff]
    %v33 = vld [vmem:[%s4 + $0x18] sm:$0xff]
    %v34 = vld [vmem:[%s4 + $0x20] sm:$0xff]
    %v35 = vld [vmem:[%s4 + $0x28] sm:$0xff]
    %v36 = vld [vmem:[%s5] sm:$0xff]
    %v37 = vld [vmem:[%s5 + $0x8] sm:$0xff]
    %v38 = vld [vmem:[%s6] sm:$0x1]
    %v39 = vld [vmem:[%s6 + $0x1] sm:$0x1]
    %v40 = vld [vmem:[%s0] sm:$0xff]
    %v41 = vld [vmem:[%s0 + $0x8] sm:$0xff]
    %v42 = vld [vmem:[%s0 + $0x10] sm:$0xff]
    %v43 = vld [vmem:[%s0 + $0x18] sm:$0xff]
    %v44 = vld [vmem:[%s1] sm:$0xff]
    %v45 = vld [vmem:[%s1 + $0x8] sm:$0xff]
    %v46 = vld [vmem:[%s1 + $0x10] sm:$0xff]
    %v47 = vld [vmem:[%s1 + $0x18] sm:$0xff]
    %49 = vset.pattern.permute.xlu0 0
    %50 = vperm.xlu0 %49, %v36
    %v51 = vpop.permute.xlu0 %50
    %54 = vset.pattern.permute.xlu0 0
    %55 = vperm.xlu0 %54, %v37
    %v56 = vpop.permute.xlu0 %55
    %vm58 = vcmask 130048
    %v60 = vsel %vm58, %v30, 0
    %v63 = vsel %vm58, %v31, 0
    %v66 = vsel %vm58, %v40, 0
    %v69 = vsel %vm58, %v41, 0
    %v72 = vsel %vm58, %v42, 0
    %v75 = vsel %vm58, %v43, 0
    %77 = vmatpush.xpose.msra.mxu0 0.0
    %78 = vmatpush.xpose.msra.mxu0 0.0
    %79 = vmatpush.xpose.msra.mxu0 0.0
    %80 = vmatpush.xpose.msra.mxu0 0.0
    %81 = vmatpush.xpose.msra.mxu0 0.0
    %82 = vmatpush.xpose.msra.mxu0 0.0
    %83 = vmatpush.xpose.msra.mxu0 0.0
    %84 = vmatpush.xpose.msra.mxu0 0.0
    %85 = vmatpush.xpose.msra.mxu0 0.0
    %86 = vmatpush.xpose.msra.mxu0 0.0
    %87 = vmatpush.xpose.msra.mxu0 0.0
    %88 = vmatpush.xpose.msra.mxu0 0.0
    %89 = vmatpush.xpose.msra.mxu0 %v75
    %90 = vmatpush.xpose.msra.mxu0 %v72
    %91 = vmatpush.xpose.msra.mxu0 %v69
    %92 = vmatpush.xpose.msra.mxu0 %v66
    %93 = vmatmul.f32.gmra.mxu0 %v60
    %v94 = vpop.f32.mrf.mxu0
    %v95 = vadd.f32 %v51, %v94
    %96 = vmatmul.f32.gmra.mxu0 %v63
    %v97 = vpop.f32.mrf.mxu0
    %v98 = vadd.f32 %v56, %v97
    %99 = vdwg.mxu0
    %v100 = vperm.slane %v38, 0
    %v102 = vsel %vm58, %v44, 0
    %v105 = vsel %vm58, %v45, 0
    %v108 = vsel %vm58, %v46, 0
    %v111 = vsel %vm58, %v47, 0
    %113 = vmatpush.msra.mxu0 0.0
    %114 = vmatpush.msra.mxu0 0.0
    %115 = vmatpush.msra.mxu0 0.0
    %116 = vmatpush.msra.mxu0 0.0
    %117 = vmatpush.msra.mxu0 0.0
    %118 = vmatpush.msra.mxu0 0.0
    %119 = vmatpush.msra.mxu0 0.0
    %120 = vmatpush.msra.mxu0 0.0
    %121 = vmatpush.msra.mxu0 0.0
    %122 = vmatpush.msra.mxu0 0.0
    %123 = vmatpush.msra.mxu0 0.0
    %124 = vmatpush.msra.mxu0 0.0
    %125 = vmatpush.msra.mxu0 0.0
    %126 = vmatpush.msra.mxu0 0.0
    %127 = vmatpush.msra.mxu0 %v33
    %128 = vmatpush.msra.mxu0 %v32
    %129 = vmatmul.f32.gmra.mxu0 %v102
    %v130 = vpop.f32.mrf.mxu0
    %v131 = vadd.f32 %v100, %v130
    %132 = vmatmul.f32.gmra.mxu0 %v105
    %v133 = vpop.f32.mrf.mxu0
    %v134 = vadd.f32 %v100, %v133
    %135 = vmatmul.f32.gmra.mxu0 %v108
    %v136 = vpop.f32.mrf.mxu0
    %v137 = vadd.f32 %v100, %v136
    %138 = vmatmul.f32.gmra.mxu0 %v111
    %v139 = vpop.f32.mrf.mxu0
    %v140 = vadd.f32 %v100, %v139
    %141 = vdwg.mxu0
    %v142 = vld [vmem:[%s2] sm:$0x3]
    %143 = vset.pattern.permute.xlu0 1
    %144 = vperm.xlu0 %143, %v36
    %v145 = vpop.permute.xlu0 %144
    %147 = vset.pattern.permute.xlu0 1
    %148 = vperm.xlu0 %147, %v37
    %v149 = vpop.permute.xlu0 %148
    %v152 = vsel %vm58, %v34, 0
    %v155 = vsel %vm58, %v35, 0
    %v158 = vsel %vm58, %v142, 0
    %160 = vmatpush.xpose.msra.mxu0 0.0
    %161 = vmatpush.xpose.msra.mxu0 0.0
    %162 = vmatpush.xpose.msra.mxu0 0.0
    %163 = vmatpush.xpose.msra.mxu0 0.0
    %164 = vmatpush.xpose.msra.mxu0 0.0
    %165 = vmatpush.xpose.msra.mxu0 0.0
    %166 = vmatpush.xpose.msra.mxu0 0.0
    %167 = vmatpush.xpose.msra.mxu0 0.0
    %168 = vmatpush.xpose.msra.mxu0 0.0
    %169 = vmatpush.xpose.msra.mxu0 0.0
    %170 = vmatpush.xpose.msra.mxu0 0.0
    %171 = vmatpush.xpose.msra.mxu0 0.0
    %172 = vmatpush.xpose.msra.mxu0 0.0
    %173 = vmatpush.xpose.msra.mxu0 0.0
    %174 = vmatpush.xpose.msra.mxu0 0.0
    %175 = vmatpush.xpose.msra.mxu0 %v158
    %176 = vmatmul.f32.gmra.mxu0 %v152
    %v177 = vpop.f32.mrf.mxu0
    %v178 = vadd.f32 %v145, %v177
    %179 = vmatmul.f32.gmra.mxu0 %v155
    %v180 = vpop.f32.mrf.mxu0
    %v181 = vadd.f32 %v149, %v180
    %182 = vdwg.mxu0
    %v184 = vsel %vm58, %v95, 0
    %v187 = vsel %vm58, %v98, 0
    %189 = vmatpush.msra.mxu0 0.0
    %190 = vmatpush.msra.mxu0 0.0
    %191 = vmatpush.msra.mxu0 0.0
    %192 = vmatpush.msra.mxu0 0.0
    %193 = vmatpush.msra.mxu0 0.0
    %194 = vmatpush.msra.mxu0 0.0
    %195 = vmatpush.msra.mxu0 0.0
    %196 = vmatpush.msra.mxu0 0.0
    %197 = vmatpush.msra.mxu0 0.0
    %198 = vmatpush.msra.mxu0 0.0
    %199 = vmatpush.msra.mxu0 0.0
    %200 = vmatpush.msra.mxu0 0.0
    %201 = vmatpush.msra.mxu0 0.0
    %202 = vmatpush.msra.mxu0 0.0
    %203 = vmatpush.msra.mxu0 %v134
    %204 = vmatpush.msra.mxu0 %v131
    %205 = vmatmul.f32.gmra.mxu0 %v184
    %v206 = vpop.f32.mrf.mxu0
    %v207 = vadd.f32 0.0, %v206
    %208 = vmatmul.f32.gmra.mxu0 %v187
    %v209 = vpop.f32.mrf.mxu0
    %v210 = vadd.f32 0.0, %v209
    %211 = vdwg.mxu0
    %v212 = vld [vmem:[%s3] sm:$0xff]
    %v213 = vld [vmem:[%s3 + $0x8] sm:$0xff]
    %v214 = vld [vmem:[%s3 + $0x10] sm:$0xff]
    %v215 = vld [vmem:[%s3 + $0x18] sm:$0xff]
    %v216 = vmul.f32 %v207, %v212
    %v217 = vmul.f32 %v210, %v213
    %v218 = vmul.f32 %v207, %v214
    %v219 = vmul.f32 %v210, %v215
    %v220 = vsel %vm58, %v216, -inf
    %221 = vmax.xlane.f32.xlu0 %v220
    %v222 = vpop.xlane.xlu0 %221
    %v223 = vsel %vm58, %v217, -inf
    %224 = vmax.xlane.f32.xlu0 %v223
    %v225 = vpop.xlane.xlu0 %224
    %v226 = vsel %vm58, %v218, -inf
    %227 = vmax.xlane.f32.xlu0 %v226
    %v228 = vpop.xlane.xlu0 %227
    %v229 = vsel %vm58, %v219, -inf
    %230 = vmax.xlane.f32.xlu0 %v229
    %v231 = vpop.xlane.xlu0 %230
    %v232 = vsub.f32 %v216, %v222
    %v233 = vsub.f32 %v217, %v225
    %v234 = vsub.f32 %v218, %v228
    %v235 = vsub.f32 %v219, %v231
    %v236 = vmul.f32 %v232, 1.442695
    %v237 = vpow.pop %v236
    %v238 = vmul.f32 %v233, 1.442695
    %v239 = vpow.pop %v238
    %v240 = vmul.f32 %v234, 1.442695
    %v241 = vpow.pop %v240
    %v242 = vmul.f32 %v235, 1.442695
    %v243 = vpow.pop %v242
    %vm244 = vcmask 7168
    %v245 = vsel %vm244, %v178, 1.0
    %v246 = vsel %vm244, %v181, 1.0
    %v248 = vsel %vm58, %v237, 0
    %v251 = vsel %vm58, %v239, 0
    %v254 = vsel %vm58, %v241, 0
    %v257 = vsel %vm58, %v243, 0
    %259 = vmatpush.msra.mxu0 0.0
    %260 = vmatpush.msra.mxu0 0.0
    %261 = vmatpush.msra.mxu0 0.0
    %262 = vmatpush.msra.mxu0 0.0
    %263 = vmatpush.msra.mxu0 0.0
    %264 = vmatpush.msra.mxu0 0.0
    %265 = vmatpush.msra.mxu0 0.0
    %266 = vmatpush.msra.mxu0 0.0
    %267 = vmatpush.msra.mxu0 0.0
    %268 = vmatpush.msra.mxu0 0.0
    %269 = vmatpush.msra.mxu0 0.0
    %270 = vmatpush.msra.mxu0 0.0
    %271 = vmatpush.msra.mxu0 0.0
    %272 = vmatpush.msra.mxu0 0.0
    %273 = vmatpush.msra.mxu0 %v246
    %274 = vmatpush.msra.mxu0 %v245
    %275 = vmatmul.f32.gmra.mxu0 %v248
    %v276 = vpop.f32.mrf.mxu0
    %v277 = vadd.f32 0.0, %v276
    %278 = vmatmul.f32.gmra.mxu0 %v251
    %v279 = vpop.f32.mrf.mxu0
    %v280 = vadd.f32 0.0, %v279
    %281 = vmatmul.f32.gmra.mxu0 %v254
    %v282 = vpop.f32.mrf.mxu0
    %v283 = vadd.f32 0.0, %v282
    %284 = vmatmul.f32.gmra.mxu0 %v257
    %v285 = vpop.f32.mrf.mxu0
    %v286 = vadd.f32 0.0, %v285
    %287 = vdwg.mxu0
    %292 = vrot.lane.b32.xlu0 %v277, 127
    %v293 = vpop.permute.xlu0 %292
    %294 = vrot.lane.b32.xlu0 %v280, 127
    %v295 = vpop.permute.xlu0 %294
    %296 = vrot.lane.b32.xlu0 %v283, 127
    %v297 = vpop.permute.xlu0 %296
    %298 = vrot.lane.b32.xlu0 %v286, 127
    %v299 = vpop.permute.xlu0 %298
    %v304 = vrcp.pop %v293
    %v305 = vmul.f32 %v293, %v304
    %v306 = vsub.f32 1.0, %v305
    %v307 = vmul.f32 %v304, %v306
    %v308 = vadd.f32 %v304, %v307
    %vm309 = vweird.f32 %v293
    %vm310 = vweird.f32 %v304
    %vm311 = vmor %vm309, %vm310
    %v312 = vsel %vm311, %v304, %v308
    %v313 = vand.u32 2147483647, %v293
    %vm314 = vcmp.eq.f32.partialorder %v313, 8.507059e+37
    %v315 = vand.u32 %v293, 2147483648
    %v316 = vor.u32 1.1754944e-38, %v315
    %v317 = vsel %vm314, %v316, %v312
    %v318 = vmul.f32 %v277, %v317
    %v319 = vrcp.pop %v295
    %v320 = vmul.f32 %v295, %v319
    %v321 = vsub.f32 1.0, %v320
    %v322 = vmul.f32 %v319, %v321
    %v323 = vadd.f32 %v319, %v322
    %vm324 = vweird.f32 %v295
    %vm325 = vweird.f32 %v319
    %vm326 = vmor %vm324, %vm325
    %v327 = vsel %vm326, %v319, %v323
    %v328 = vand.u32 2147483647, %v295
    %vm329 = vcmp.eq.f32.partialorder %v328, 8.507059e+37
    %v330 = vand.u32 %v295, 2147483648
    %v331 = vor.u32 1.1754944e-38, %v330
    %v332 = vsel %vm329, %v331, %v327
    %v333 = vmul.f32 %v280, %v332
    %v334 = vrcp.pop %v297
    %v335 = vmul.f32 %v297, %v334
    %v336 = vsub.f32 1.0, %v335
    %v337 = vmul.f32 %v334, %v336
    %v338 = vadd.f32 %v334, %v337
    %vm339 = vweird.f32 %v297
    %vm340 = vweird.f32 %v334
    %vm341 = vmor %vm339, %vm340
    %v342 = vsel %vm341, %v334, %v338
    %v343 = vand.u32 2147483647, %v297
    %vm344 = vcmp.eq.f32.partialorder %v343, 8.507059e+37
    %v345 = vand.u32 %v297, 2147483648
    %v346 = vor.u32 1.1754944e-38, %v345
    %v347 = vsel %vm344, %v346, %v342
    %v348 = vmul.f32 %v283, %v347
    %v349 = vrcp.pop %v299
    %v350 = vmul.f32 %v299, %v349
    %v351 = vsub.f32 1.0, %v350
    %v352 = vmul.f32 %v349, %v351
    %v353 = vadd.f32 %v349, %v352
    %vm354 = vweird.f32 %v299
    %vm355 = vweird.f32 %v349
    %vm356 = vmor %vm354, %vm355
    %v357 = vsel %vm356, %v349, %v353
    %v358 = vand.u32 2147483647, %v299
    %vm359 = vcmp.eq.f32.partialorder %v358, 8.507059e+37
    %v360 = vand.u32 %v299, 2147483648
    %v361 = vor.u32 1.1754944e-38, %v360
    %v362 = vsel %vm359, %v361, %v357
    %v363 = vmul.f32 %v286, %v362
    %368 = vset.pattern.permute.xlu0 0
    %369 = vperm.xlu0 %368, %v318
    %v370 = vpop.permute.xlu0 %369
    %371 = vset.pattern.permute.xlu0 0
    %372 = vperm.xlu0 %371, %v333
    %v373 = vpop.permute.xlu0 %372
    %374 = vset.pattern.permute.xlu0 0
    %375 = vperm.xlu0 %374, %v348
    %v376 = vpop.permute.xlu0 %375
    %377 = vset.pattern.permute.xlu0 0
    %378 = vperm.xlu0 %377, %v363
    %v379 = vpop.permute.xlu0 %378
    %v380 = vlaneseq
    %v381 = vand.u32 %v380, 127
    %v382 = vperm.slane %v370, %v381
    %v383 = vadd.s32 %v381, 4294967288
    %v384 = vperm.slane %v373, %v383
    %vm385 = vcmask 130112
    %v386 = vsel %vm385, %v384, %v382
    %v387 = vadd.s32 %v381, 4294967280
    %v388 = vperm.slane %v376, %v387
    %vm389 = vcmask 195712
    %v390 = vsel %vm389, %v388, %v386
    %v391 = vadd.s32 %v381, 4294967272
    %v392 = vperm.slane %v379, %v391
    %vm393 = vcmask 261312
    %v394 = vsel %vm393, %v392, %v390
    %vm396 = vcmask 253952
    %397 = vst.msk [vmem:[#allocation2] sm:$0x1] %vm396, %v394
    %398 = vrot.lane.b32.xlu0 %v95, 112
    %v399 = vpop.permute.xlu0 %398
    %400 = vrot.lane.b32.xlu0 %v98, 112
    %v401 = vpop.permute.xlu0 %400
    %v402 = vsel %vm58, %v399, 0
    %v404 = vsel %vm58, %v401, 0
    %406 = vmatpush.msra.mxu0 0.0
    %407 = vmatpush.msra.mxu0 0.0
    %408 = vmatpush.msra.mxu0 0.0
    %409 = vmatpush.msra.mxu0 0.0
    %410 = vmatpush.msra.mxu0 0.0
    %411 = vmatpush.msra.mxu0 0.0
    %412 = vmatpush.msra.mxu0 0.0
    %413 = vmatpush.msra.mxu0 0.0
    %414 = vmatpush.msra.mxu0 0.0
    %415 = vmatpush.msra.mxu0 0.0
    %416 = vmatpush.msra.mxu0 0.0
    %417 = vmatpush.msra.mxu0 0.0
    %418 = vmatpush.msra.mxu0 0.0
    %419 = vmatpush.msra.mxu0 0.0
    %420 = vmatpush.msra.mxu0 %v140
    %421 = vmatpush.msra.mxu0 %v137
    %422 = vmatmul.f32.gmra.mxu0 %v402
    %v423 = vpop.f32.mrf.mxu0
    %v424 = vadd.f32 0.0, %v423
    %425 = vmatmul.f32.gmra.mxu0 %v404
    %v426 = vpop.f32.mrf.mxu0
    %v427 = vadd.f32 0.0, %v426
    %428 = vdwg.mxu0
    %s429 = scalar_lea.vmem %s3, 32
    %v430 = vld [vmem:[%s429] sm:$0xff]
    %v431 = vld [vmem:[%s429 + $0x8] sm:$0xff]
    %v432 = vld [vmem:[%s429 + $0x10] sm:$0xff]
    %v433 = vld [vmem:[%s429 + $0x18] sm:$0xff]
    %v434 = vmul.f32 %v424, %v430
    %v435 = vmul.f32 %v427, %v431
    %v436 = vmul.f32 %v424, %v432
    %v437 = vmul.f32 %v427, %v433
    %v438 = vsel %vm58, %v434, -inf
    %439 = vmax.xlane.f32.xlu0 %v438
    %v440 = vpop.xlane.xlu0 %439
    %v441 = vsel %vm58, %v435, -inf
    %442 = vmax.xlane.f32.xlu0 %v441
    %v443 = vpop.xlane.xlu0 %442
    %v444 = vsel %vm58, %v436, -inf
    %445 = vmax.xlane.f32.xlu0 %v444
    %v446 = vpop.xlane.xlu0 %445
    %v447 = vsel %vm58, %v437, -inf
    %448 = vmax.xlane.f32.xlu0 %v447
    %v449 = vpop.xlane.xlu0 %448
    %v450 = vsub.f32 %v434, %v440
    %v451 = vsub.f32 %v435, %v443
    %v452 = vsub.f32 %v436, %v446
    %v453 = vsub.f32 %v437, %v449
    %v454 = vmul.f32 %v450, 1.442695
    %v455 = vpow.pop %v454
    %v456 = vmul.f32 %v451, 1.442695
    %v457 = vpow.pop %v456
    %v458 = vmul.f32 %v452, 1.442695
    %v459 = vpow.pop %v458
    %v460 = vmul.f32 %v453, 1.442695
    %v461 = vpow.pop %v460
    %464 = vrot.lane.b32.xlu0 %v178, 127
    %v465 = vpop.permute.xlu0 %464
    %466 = vrot.lane.b32.xlu0 %v181, 127
    %v467 = vpop.permute.xlu0 %466
    %v470 = vsel %vm244, %v465, 1.0
    %v471 = vsel %vm244, %v467, 1.0
    %v473 = vsel %vm58, %v455, 0
    %v476 = vsel %vm58, %v457, 0
    %v479 = vsel %vm58, %v459, 0
    %v482 = vsel %vm58, %v461, 0
    %484 = vmatpush.msra.mxu0 0.0
    %485 = vmatpush.msra.mxu0 0.0
    %486 = vmatpush.msra.mxu0 0.0
    %487 = vmatpush.msra.mxu0 0.0
    %488 = vmatpush.msra.mxu0 0.0
    %489 = vmatpush.msra.mxu0 0.0
    %490 = vmatpush.msra.mxu0 0.0
    %491 = vmatpush.msra.mxu0 0.0
    %492 = vmatpush.msra.mxu0 0.0
    %493 = vmatpush.msra.mxu0 0.0
    %494 = vmatpush.msra.mxu0 0.0
    %495 = vmatpush.msra.mxu0 0.0
    %496 = vmatpush.msra.mxu0 0.0
    %497 = vmatpush.msra.mxu0 0.0
    %498 = vmatpush.msra.mxu0 %v471
    %499 = vmatpush.msra.mxu0 %v470
    %500 = vmatmul.f32.gmra.mxu0 %v473
    %v501 = vpop.f32.mrf.mxu0
    %v502 = vadd.f32 0.0, %v501
    %503 = vmatmul.f32.gmra.mxu0 %v476
    %v504 = vpop.f32.mrf.mxu0
    %v505 = vadd.f32 0.0, %v504
    %506 = vmatmul.f32.gmra.mxu0 %v479
    %v507 = vpop.f32.mrf.mxu0
    %v508 = vadd.f32 0.0, %v507
    %509 = vmatmul.f32.gmra.mxu0 %v482
    %v510 = vpop.f32.mrf.mxu0
    %v511 = vadd.f32 0.0, %v510
    %512 = vdwg.mxu0
    %517 = vrot.lane.b32.xlu0 %v502, 127
    %v518 = vpop.permute.xlu0 %517
    %519 = vrot.lane.b32.xlu0 %v505, 127
    %v520 = vpop.permute.xlu0 %519
    %521 = vrot.lane.b32.xlu0 %v508, 127
    %v522 = vpop.permute.xlu0 %521
    %523 = vrot.lane.b32.xlu0 %v511, 127
    %v524 = vpop.permute.xlu0 %523
    %v529 = vrcp.pop %v518
    %v530 = vmul.f32 %v518, %v529
    %v531 = vsub.f32 1.0, %v530
    %v532 = vmul.f32 %v529, %v531
    %v533 = vadd.f32 %v529, %v532
    %vm534 = vweird.f32 %v518
    %vm535 = vweird.f32 %v529
    %vm536 = vmor %vm534, %vm535
    %v537 = vsel %vm536, %v529, %v533
    %v538 = vand.u32 2147483647, %v518
    %vm539 = vcmp.eq.f32.partialorder %v538, 8.507059e+37
    %v540 = vand.u32 %v518, 2147483648
    %v541 = vor.u32 1.1754944e-38, %v540
    %v542 = vsel %vm539, %v541, %v537
    %v543 = vmul.f32 %v502, %v542
    %v544 = vrcp.pop %v520
    %v545 = vmul.f32 %v520, %v544
    %v546 = vsub.f32 1.0, %v545
    %v547 = vmul.f32 %v544, %v546
    %v548 = vadd.f32 %v544, %v547
    %vm549 = vweird.f32 %v520
    %vm550 = vweird.f32 %v544
    %vm551 = vmor %vm549, %vm550
    %v552 = vsel %vm551, %v544, %v548
    %v553 = vand.u32 2147483647, %v520
    %vm554 = vcmp.eq.f32.partialorder %v553, 8.507059e+37
    %v555 = vand.u32 %v520, 2147483648
    %v556 = vor.u32 1.1754944e-38, %v555
    %v557 = vsel %vm554, %v556, %v552
    %v558 = vmul.f32 %v505, %v557
    %v559 = vrcp.pop %v522
    %v560 = vmul.f32 %v522, %v559
    %v561 = vsub.f32 1.0, %v560
    %v562 = vmul.f32 %v559, %v561
    %v563 = vadd.f32 %v559, %v562
    %vm564 = vweird.f32 %v522
    %vm565 = vweird.f32 %v559
    %vm566 = vmor %vm564, %vm565
    %v567 = vsel %vm566, %v559, %v563
    %v568 = vand.u32 2147483647, %v522
    %vm569 = vcmp.eq.f32.partialorder %v568, 8.507059e+37
    %v570 = vand.u32 %v522, 2147483648
    %v571 = vor.u32 1.1754944e-38, %v570
    %v572 = vsel %vm569, %v571, %v567
    %v573 = vmul.f32 %v508, %v572
    %v574 = vrcp.pop %v524
    %v575 = vmul.f32 %v524, %v574
    %v576 = vsub.f32 1.0, %v575
    %v577 = vmul.f32 %v574, %v576
    %v578 = vadd.f32 %v574, %v577
    %vm579 = vweird.f32 %v524
    %vm580 = vweird.f32 %v574
    %vm581 = vmor %vm579, %vm580
    %v582 = vsel %vm581, %v574, %v578
    %v583 = vand.u32 2147483647, %v524
    %vm584 = vcmp.eq.f32.partialorder %v583, 8.507059e+37
    %v585 = vand.u32 %v524, 2147483648
    %v586 = vor.u32 1.1754944e-38, %v585
    %v587 = vsel %vm584, %v586, %v582
    %v588 = vmul.f32 %v511, %v587
    %593 = vset.pattern.permute.xlu0 0
    %594 = vperm.xlu0 %593, %v543
    %v595 = vpop.permute.xlu0 %594
    %596 = vset.pattern.permute.xlu0 0
    %597 = vperm.xlu0 %596, %v558
    %v598 = vpop.permute.xlu0 %597
    %599 = vset.pattern.permute.xlu0 0
    %600 = vperm.xlu0 %599, %v573
    %v601 = vpop.permute.xlu0 %600
    %602 = vset.pattern.permute.xlu0 0
    %603 = vperm.xlu0 %602, %v588
    %v604 = vpop.permute.xlu0 %603
    %v605 = vperm.slane %v595, %v381
    %v606 = vperm.slane %v598, %v383
    %v607 = vsel %vm385, %v606, %v605
    %v608 = vperm.slane %v601, %v387
    %v609 = vsel %vm389, %v608, %v607
    %v610 = vperm.slane %v604, %v391
    %v611 = vsel %vm393, %v610, %v609
    %613 = vst.msk [vmem:[#allocation2 + $0x1] sm:$0x1] %vm396, %v611
    %v614 = vld [vmem:[#allocation2] sm:$0x3]
    %v615 = vld [vmem:[%s7] sm:$0xff]
    %v616 = vld [vmem:[%s7 + $0x8] sm:$0xff]
    %v617 = vld [vmem:[%s7 + $0x10] sm:$0xff]
    %v618 = vld [vmem:[%s7 + $0x18] sm:$0xff]
    %v619 = vperm.slane %v39, 0
    %vm620 = vcmask 261120
    %v622 = vsel %vm620, %v614, 0
    %624 = vmatpush.msra.mxu0 0.0
    %625 = vmatpush.msra.mxu0 0.0
    %626 = vmatpush.msra.mxu0 0.0
    %627 = vmatpush.msra.mxu0 0.0
    %628 = vmatpush.msra.mxu0 0.0
    %629 = vmatpush.msra.mxu0 0.0
    %630 = vmatpush.msra.mxu0 0.0
    %631 = vmatpush.msra.mxu0 0.0
    %632 = vmatpush.msra.mxu0 0.0
    %633 = vmatpush.msra.mxu0 0.0
    %634 = vmatpush.msra.mxu0 0.0
    %635 = vmatpush.msra.mxu0 0.0
    %636 = vmatpush.msra.mxu0 %v618
    %637 = vmatpush.msra.mxu0 %v617
    %638 = vmatpush.msra.mxu0 %v616
    %639 = vmatpush.msra.mxu0 %v615
    %640 = vmatmul.f32.gmra.mxu0 %v622
    %v641 = vpop.f32.mrf.mxu0
    %v642 = vadd.f32 %v619, %v641
    %643 = vdwg.mxu0
    %vm644 = vcmask 123904
    %645 = vst.msk [vmem:[#allocation3] sm:$0x3] %vm644, %v642
    // Predicated region
    $region34: #{tpu_custom_call.1} parent=1 // pred_check
      _
    $region35: #{tpu_custom_call.1} parent=1 // pred_check_branch
      %647 = sbr.rel (0) target = $region37
    $region36: #{tpu_custom_call.1} parent=1 // pred_region
      %649 = vsyncadd [#allocation4], 0
      %s651 = sshll.u32 [#allocation3], 4
      %s652 = int_to_ptr.vmem [resolvable:$true] %s651
      %s653 = sshll.u32 %s8, 4
      %s654 = int_to_ptr.hbm [resolvable:$true] %s653
      %656 = dma.vmem_to_hbm [thread:$0]  %s652, 32, %s654, [#allocation4]
    $region37: #{tpu_custom_call.1} parent=1 // pred_fallthru
      _
    // Predicated region
    $region38: #{tpu_custom_call.1} parent=1 // pred_check
      _
    $region39: #{tpu_custom_call.1} parent=1 // pred_check_branch
      %658 = sbr.rel (0) target = $region41
    $region40: #{tpu_custom_call.1} parent=1 // pred_region
      %660 = dma.done [#allocation4], 32
    $region41: #{tpu_custom_call.1} parent=1 // pred_fallthru
      _
    %661 = vsyncpa [#allocation4], 1

</llo_original>
